<compile_context>
chip_gen: v6e
topology: v6e:2x2x1
jax: 0.10.0
libtpu: 0.0.40
codegen_flags: <defaults>
</compile_context>

<pallas_src>
import functools

import jax
import jax.numpy as jnp
from jax.experimental import pallas as pl
from jax.experimental.pallas import tpu as pltpu

_NEG = -1e30    # "masked" logit; avoids inf-inf NaN paths
_SLOPE = 0.01   # F.leaky_relu default negative slope


def _gat_proj_kernel(h_ref, wt_ref, b_ref, asrc_ref, adst_ref, ab_ref,
                     z_ref, ed_ref, es_ref):
    # z = h @ W^T + b  (bf16 operands on the MXU, f32 accumulation)
    z = jnp.dot(h_ref[...], wt_ref[...],
                preferred_element_type=jnp.float32) + b_ref[...]
    # e_dst: VPU multiply + row reduce; fold the attention bias a_b in here.
    ed_ref[...] = jnp.sum(z * adst_ref[...], axis=-1, keepdims=True) + ab_ref[0]
    # e_src directly in lane (row) layout [1, tq]: contract z's feature dim.
    es_ref[...] = jax.lax.dot_general(
        asrc_ref[...], z, (((1,), (1,)), ((), ())),
        preferred_element_type=jnp.float32)
    z_ref[...] = z.astype(z_ref.dtype)


def _gat_agg_kernel(ed_ref, es_ref, z_ref, adj_ref, out_ref,
                    m_sc, l_sc, acc_sc, *, tk):
    k = pl.program_id(1)

    @pl.when(k == 0)
    def _init():
        m_sc[...] = jnp.full(m_sc.shape, _NEG, m_sc.dtype)
        l_sc[...] = jnp.zeros(l_sc.shape, l_sc.dtype)
        acc_sc[...] = jnp.zeros(acc_sc.shape, acc_sc.dtype)

    mask = adj_ref[...] > 0                              # [tq, tk] from int8 adjacency
    s = ed_ref[...] + es_ref[...]                        # [tq,1] + [1,tk] -> [tq,tk]
    s = jnp.where(s >= 0, s, _SLOPE * s)                 # leaky_relu
    s = jnp.where(mask, s, _NEG)                         # mask non-edges

    m_prev = m_sc[...]
    m_new = jnp.maximum(m_prev, jnp.max(s, axis=1, keepdims=True))
    corr = jnp.exp(m_prev - m_new)
    p = jnp.exp(s - m_new) * mask.astype(jnp.float32)    # exact zeros off-graph

    l_sc[...] = corr * l_sc[...] + jnp.sum(p, axis=1, keepdims=True)

    s0 = pl.multiple_of(k * tk, tk)
    z_blk = z_ref[pl.ds(s0, tk), :]                      # [tk, dp] bf16, resident z
    acc_sc[...] = corr * acc_sc[...] + jnp.dot(
        p.astype(z_blk.dtype), z_blk, preferred_element_type=jnp.float32)
    m_sc[...] = m_new

    @pl.when(k == pl.num_programs(1) - 1)
    def _finalize():
        l = l_sc[...]
        has = l > 0.0                                    # isolated nodes -> 0 output
        inv = pl.reciprocal(jnp.where(has, l, 1.0), approx=True)
        out_ref[...] = jnp.where(has, acc_sc[...] * inv, 0.0).astype(out_ref.dtype)


def gat_layer_forward(h, w, b, a, a_b, adj, *, tq=128, tk=128):
    """h: [N, in_dim]; w: [out_dim, in_dim]; b: [out_dim];
       a: [1, 2*out_dim]; a_b: scalar; adj: [N, N], adj[dst, src] != 0 for edge src->dst."""
    N, in_dim = h.shape
    out_dim = w.shape[0]
    dp = max(128, ((out_dim + 127) // 128) * 128)        # lane-dense padded feature dim

    tq = min(tq, N)
    tk = min(tk, N)
    assert N % tq == 0 and N % tk == 0, "N must be a multiple of the tile sizes"

    f32 = jnp.float32
    w_f = jnp.asarray(w, f32)
    a_f = jnp.asarray(a, f32)
    # Zero-pad the feature dim so output stores are unmasked 128-lane vst's;
    # padded columns contribute exactly 0 to e_src/e_dst and to the output.
    wt = jnp.zeros((in_dim, dp), f32).at[:, :out_dim].set(w_f.T)
    b_p = jnp.zeros((1, dp), f32).at[:, :out_dim].set(jnp.asarray(b, f32)[None, :])
    a_src = jnp.zeros((1, dp), f32).at[:, :out_dim].set(a_f[:, :out_dim])
    a_dst = jnp.zeros((1, dp), f32).at[:, :out_dim].set(a_f[:, out_dim:])
    ab = jnp.asarray(a_b, f32).reshape(1)

    h_bf = jnp.asarray(h, jnp.bfloat16)                  # bf16 MXU operands
    wt_bf = wt.astype(jnp.bfloat16)
    adj_i8 = (jnp.asarray(adj) != 0).astype(jnp.int8)    # 4x less HBM traffic than f32

    vmem = pltpu.MemorySpace.VMEM
    smem = pltpu.MemorySpace.SMEM

    # ---- pass 1: z = h @ W^T + b and per-node attention terms e_src / e_dst ----
    z, ed, es = pl.pallas_call(
        _gat_proj_kernel,
        out_shape=(
            jax.ShapeDtypeStruct((N, dp), jnp.bfloat16),   # z (kept resident in pass 2)
            jax.ShapeDtypeStruct((N, 1), f32),             # e_dst + a_b
            jax.ShapeDtypeStruct((1, N), f32),             # e_src (lane layout)
        ),
        grid=(N // tq,),
        in_specs=[
            pl.BlockSpec((tq, in_dim), lambda i: (i, 0)),
            pl.BlockSpec((in_dim, dp), lambda i: (0, 0)),
            pl.BlockSpec((1, dp), lambda i: (0, 0)),
            pl.BlockSpec((1, dp), lambda i: (0, 0)),
            pl.BlockSpec((1, dp), lambda i: (0, 0)),
            pl.BlockSpec(memory_space=smem),               # scalar a_b in SMEM
        ],
        out_specs=(
            pl.BlockSpec((tq, dp), lambda i: (i, 0)),
            pl.BlockSpec((tq, 1), lambda i: (i, 0)),
            pl.BlockSpec((1, tq), lambda i: (0, i)),
        ),
        compiler_params=pltpu.CompilerParams(
            dimension_semantics=("parallel",)),
    )(h_bf, wt_bf, b_p, a_src, a_dst, ab)

    # ---- pass 2: tiled masked online-softmax aggregation over src tiles -------
    out = pl.pallas_call(
        functools.partial(_gat_agg_kernel, tk=tk),
        out_shape=jax.ShapeDtypeStruct((N, dp), f32),
        grid=(N // tq, N // tk),                           # (dst tiles, src tiles)
        in_specs=[
            pl.BlockSpec((tq, 1), lambda i, k: (i, 0)),    # e_dst tile
            pl.BlockSpec((1, tk), lambda i, k: (0, k)),    # e_src tile
            pl.BlockSpec(memory_space=vmem),               # whole bf16 z resident
            pl.BlockSpec((tq, tk), lambda i, k: (i, k)),   # int8 adjacency stream
        ],
        out_specs=pl.BlockSpec((tq, dp), lambda i, k: (i, 0)),
        scratch_shapes=[
            pltpu.VMEM((tq, 1), f32),                      # running max
            pltpu.VMEM((tq, 1), f32),                      # running denom
            pltpu.VMEM((tq, dp), f32),                     # running weighted sum
        ],
        compiler_params=pltpu.CompilerParams(
            dimension_semantics=("parallel", "arbitrary"),
            # explicit budget: double-buffered tiles + resident z stay well
            # below v7x's 64 MiB physical VMEM (v5e/v6e have 128 MiB)
            vmem_limit_bytes=48 * 1024 * 1024,
        ),
    )(ed, es, z, adj_i8)

    return out if dp == out_dim else out[:, :out_dim]


def _reference(h, w, b, a, a_b, adj):
    # pure-JAX f32 reference mirroring the DGL semantics
    z = h @ w.T + b
    out_dim = w.shape[0]
    e_src = z @ a[0, :out_dim]
    e_dst = z @ a[0, out_dim:]
    s = e_dst[:, None] + e_src[None, :] + a_b
    s = jnp.where(s >= 0, s, 0.01 * s)
    s_masked = jnp.where(adj > 0, s, -1e30)
    m = jnp.max(s_masked, axis=1, keepdims=True)
    p = jnp.exp(s_masked - m) * (adj > 0)
    denom = jnp.sum(p, axis=1, keepdims=True)
    has = denom > 0
    alpha = p / jnp.where(has, denom, 1.0)
    return jnp.where(has, alpha @ z, 0.0)


if __name__ == "__main__":
    N, in_dim, out_dim = 256, 64, 128
    key = jax.random.PRNGKey(0)
    k_h, k_w, k_a, k_b, k_ab, k_adj = jax.random.split(key, 6)

    # node features
    h = jax.random.normal(k_h, (N, in_dim), jnp.float32)

    # Linear(in_dim, out_dim): xavier_normal_ with gain=sqrt(2) (relu gain)
    gain = jnp.sqrt(2.0)
    std_w = gain * jnp.sqrt(2.0 / (in_dim + out_dim))
    w = std_w * jax.random.normal(k_w, (out_dim, in_dim), jnp.float32)
    b = 0.01 * jax.random.normal(k_b, (out_dim,), jnp.float32)

    # cal_att Linear(2*out_dim, 1): xavier_normal_ with gain=sqrt(2)
    std_a = gain * jnp.sqrt(2.0 / (2 * out_dim + 1))
    a = std_a * jax.random.normal(k_a, (1, 2 * out_dim), jnp.float32)
    a_b = 0.01 * jax.random.normal(k_ab, (), jnp.float32)

    # deterministic random graph with self-loops; adj[dst, src] = 1.0 if edge src->dst
    adj = (jax.random.uniform(k_adj, (N, N)) < 0.3).astype(jnp.float32)
    adj = jnp.maximum(adj, jnp.eye(N, dtype=jnp.float32))

    out = gat_layer_forward(h, w, b, a, a_b, adj, tq=128, tk=128)
    out = jax.block_until_ready(out)

    ref = _reference(h, w, b, a, a_b, adj)
    assert out.shape == (N, out_dim)
    # bf16 MXU operands + approx reciprocal => loosen tolerance vs the f32 reference
    max_err = jnp.max(jnp.abs(out - ref))
    assert jnp.allclose(out, ref, atol=5e-2, rtol=5e-2), (
        f"mismatch vs reference (max abs err {max_err})")

    print("KERNEL_OK")
</pallas_src>

<mosaic_0001>
module attributes {stable_mosaic.version = 11 : i64} {
  func.func @_gat_proj_kernel(%arg0: i32, %arg1: memref<128x64xbf16, #tpu.memory_space<vmem>>, %arg2: memref<64x128xbf16, #tpu.memory_space<vmem>>, %arg3: memref<1x128xf32, #tpu.memory_space<vmem>>, %arg4: memref<1x128xf32, #tpu.memory_space<vmem>>, %arg5: memref<1x128xf32, #tpu.memory_space<vmem>>, %arg6: memref<1xf32, #tpu.memory_space<smem>>, %arg7: memref<128x128xbf16, #tpu.memory_space<vmem>>, %arg8: memref<128x1xf32, #tpu.memory_space<vmem>>, %arg9: memref<1x128xf32, #tpu.memory_space<vmem>>) attributes {dimension_semantics = [#tpu.dimension_semantics<parallel>], iteration_bounds = array<i64: 2>, scalar_prefetch = 0 : i64, scratch_operands = 0 : i64, tpu.core_type = #tpu.core_type<tc>, window_params = [{transform_indices = @transform_0, window_bounds = array<i64: 128, 64>}, {pipeline_mode = #tpu.pipeline_mode<synchronous>, transform_indices = @transform_1, window_bounds = array<i64: 64, 128>}, {pipeline_mode = #tpu.pipeline_mode<synchronous>, transform_indices = @transform_2, window_bounds = array<i64: 1, 128>}, {pipeline_mode = #tpu.pipeline_mode<synchronous>, transform_indices = @transform_3, window_bounds = array<i64: 1, 128>}, {pipeline_mode = #tpu.pipeline_mode<synchronous>, transform_indices = @transform_4, window_bounds = array<i64: 1, 128>}, {transform_indices = @transform_5, window_bounds = array<i64: 1>}, {transform_indices = @transform_6, window_bounds = array<i64: 128, 128>}, {transform_indices = @transform_7, window_bounds = array<i64: 128, 1>}, {transform_indices = @transform_8, window_bounds = array<i64: 1, 128>}]} {
    %c0 = arith.constant 0 : index
    %c0_0 = arith.constant 0 : index
    %0 = vector.load %arg1[%c0, %c0_0] : memref<128x64xbf16, #tpu.memory_space<vmem>>, vector<128x64xbf16>
    %c0_1 = arith.constant 0 : index
    %c0_2 = arith.constant 0 : index
    %1 = vector.load %arg2[%c0_1, %c0_2] : memref<64x128xbf16, #tpu.memory_space<vmem>>, vector<64x128xbf16>
    %cst = arith.constant dense<0.000000e+00> : vector<128x128xf32>
    %2 = tpu.matmul %0, %1, %cst {dimension_numbers = #tpu.dot_dimension_numbers<[1], [0], [0], [1], [0, 0, 1, 1], [], []>} : vector<128x64xbf16>, vector<64x128xbf16>, vector<128x128xf32> -> vector<128x128xf32>
    %c0_3 = arith.constant 0 : index
    %c0_4 = arith.constant 0 : index
    %3 = vector.load %arg3[%c0_3, %c0_4] : memref<1x128xf32, #tpu.memory_space<vmem>>, vector<1x128xf32>
    %4 = vector.broadcast %3 : vector<1x128xf32> to vector<128x128xf32>
    %5 = arith.addf %2, %4 : vector<128x128xf32>
    %c0_5 = arith.constant 0 : index
    %c0_6 = arith.constant 0 : index
    %6 = vector.load %arg5[%c0_5, %c0_6] : memref<1x128xf32, #tpu.memory_space<vmem>>, vector<1x128xf32>
    %7 = vector.broadcast %6 : vector<1x128xf32> to vector<128x128xf32>
    %8 = arith.mulf %5, %7 : vector<128x128xf32>
    %cst_7 = arith.constant dense<0.000000e+00> : vector<128xf32>
    %9 = vector.multi_reduction <add>, %8, %cst_7 [1] : vector<128x128xf32> to vector<128xf32>
    %10 = vector.shape_cast %9 : vector<128xf32> to vector<128x1xf32>
    %c0_8 = arith.constant 0 : index
    %11 = memref.load %arg6[%c0_8] : memref<1xf32, #tpu.memory_space<smem>>
    %12 = vector.broadcast %11 : f32 to vector<128x1xf32>
    %13 = arith.addf %10, %12 : vector<128x1xf32>
    %c0_9 = arith.constant 0 : index
    %c0_10 = arith.constant 0 : index
    %14 = vector.load %arg8[%c0_9, %c0_10] : memref<128x1xf32, #tpu.memory_space<vmem>>, vector<128x1xf32>
    tpu.vector_store %arg8[%c0_9, %c0_10], %13 {strides = array<i32>} : memref<128x1xf32, #tpu.memory_space<vmem>>, vector<128x1xf32>,
    %c0_11 = arith.constant 0 : index
    %c0_12 = arith.constant 0 : index
    %15 = vector.load %arg4[%c0_11, %c0_12] : memref<1x128xf32, #tpu.memory_space<vmem>>, vector<1x128xf32>
    %cst_13 = arith.constant dense<0.000000e+00> : vector<1x128xf32>
    %16 = tpu.matmul %15, %5, %cst_13 {dimension_numbers = #tpu.dot_dimension_numbers<[1], [1], [0], [0], [0, 0, 1, 0], [], []>} : vector<1x128xf32>, vector<128x128xf32>, vector<1x128xf32> -> vector<1x128xf32>
    %c0_14 = arith.constant 0 : index
    %c0_15 = arith.constant 0 : index
    %17 = vector.load %arg9[%c0_14, %c0_15] : memref<1x128xf32, #tpu.memory_space<vmem>>, vector<1x128xf32>
    tpu.vector_store %arg9[%c0_14, %c0_15], %16 {strides = array<i32>} : memref<1x128xf32, #tpu.memory_space<vmem>>, vector<1x128xf32>,
    %18 = arith.truncf %5 : vector<128x128xf32> to vector<128x128xbf16>
    %c0_16 = arith.constant 0 : index
    %c0_17 = arith.constant 0 : index
    %19 = vector.load %arg7[%c0_16, %c0_17] : memref<128x128xbf16, #tpu.memory_space<vmem>>, vector<128x128xbf16>
    tpu.vector_store %arg7[%c0_16, %c0_17], %18 {strides = array<i32>} : memref<128x128xbf16, #tpu.memory_space<vmem>>, vector<128x128xbf16>,
    return
  }
  func.func @transform_0(%arg0: i32) -> (i32, i32) {
    %c0_i32 = arith.constant 0 : i32
    %c0_i32_0 = arith.constant 0 : i32
    return %arg0, %c0_i32 : i32, i32
  }
  func.func @transform_1(%arg0: i32) -> (i32, i32) {
    %c0_i32 = arith.constant 0 : i32
    %c0_i32_0 = arith.constant 0 : i32
    %c0_i32_1 = arith.constant 0 : i32
    return %c0_i32, %c0_i32_0 : i32, i32
  }
  func.func @transform_2(%arg0: i32) -> (i32, i32) {
    %c0_i32 = arith.constant 0 : i32
    %c0_i32_0 = arith.constant 0 : i32
    %c0_i32_1 = arith.constant 0 : i32
    return %c0_i32, %c0_i32_0 : i32, i32
  }
  func.func @transform_3(%arg0: i32) -> (i32, i32) {
    %c0_i32 = arith.constant 0 : i32
    %c0_i32_0 = arith.constant 0 : i32
    %c0_i32_1 = arith.constant 0 : i32
    return %c0_i32, %c0_i32_0 : i32, i32
  }
  func.func @transform_4(%arg0: i32) -> (i32, i32) {
    %c0_i32 = arith.constant 0 : i32
    %c0_i32_0 = arith.constant 0 : i32
    %c0_i32_1 = arith.constant 0 : i32
    return %c0_i32, %c0_i32_0 : i32, i32
  }
  func.func @transform_5(%arg0: i32) -> i32 {
    %c0_i32 = arith.constant 0 : i32
    %c0_i32_0 = arith.constant 0 : i32
    return %c0_i32 : i32
  }
  func.func @transform_6(%arg0: i32) -> (i32, i32) {
    %c0_i32 = arith.constant 0 : i32
    %c0_i32_0 = arith.constant 0 : i32
    return %arg0, %c0_i32 : i32, i32
  }
  func.func @transform_7(%arg0: i32) -> (i32, i32) {
    %c0_i32 = arith.constant 0 : i32
    %c0_i32_0 = arith.constant 0 : i32
    return %arg0, %c0_i32 : i32, i32
  }
  func.func @transform_8(%arg0: i32) -> (i32, i32) {
    %c0_i32 = arith.constant 0 : i32
    %c0_i32_0 = arith.constant 0 : i32
    return %c0_i32, %arg0 : i32, i32
  }
}

</mosaic_0001>

<llo_original>
// kernel: tpu_custom_call.1
$region0: #{tpu_custom_call.1}
  #allocation0 [shape = 'u32[]', space=smem, size = 0x4, offset = 0x4, fixed_abs, tag = 'smem constant byte address 0x4 - core index']
  #allocation1 [shape = 'u32[144,128]{1,0:T(1,128)}', space=vmem, size = 0x12000, scoped, tag = 'internal scratch']
  #allocation2 [shape = 'f32[1]{0:T(128)S(6)}', space=smem, size = 0x200, scoped, tag = 'scoped memory for tpu_custom_call.1']
  %s0 = inlined_call_operand.vmem [shape: bf16[256,64], index: 0, kind: input, shape index: {}]
  %s1 = inlined_call_operand.vmem [shape: bf16[64,128], index: 1, kind: input, shape index: {}]
  %s2 = inlined_call_operand.vmem [shape: f32[1,128], index: 2, kind: input, shape index: {}]
  %s3 = inlined_call_operand.vmem [shape: f32[1,128], index: 3, kind: input, shape index: {}]
  %s4 = inlined_call_operand.vmem [shape: f32[1,128], index: 4, kind: input, shape index: {}]
  %s5 = inlined_call_operand.<no memory space> [shape: f32[1], index: 5, kind: input, shape index: {}]
  %s6 = inlined_call_operand.hbm [shape: bf16[256,128], index: 6, kind: output, shape index: {0}]
  %s7 = inlined_call_operand.vmem [shape: f32[256,1], index: 7, kind: output, shape index: {1}]
  %s8 = inlined_call_operand.hbm [shape: f32[1,256], index: 8, kind: output, shape index: {2}]
  %9 = xla_tuple %s6, %s7, %s8
  %s10 = sld [smem:[#allocation0]]
  $region73: #{tpu_custom_call.1} parent=0
    _
  %s12 = ssub.s32 1, %s10
  %s13 = scalar_select 0, %s12, %s10
  %14 = sst [smem:[#allocation2]] %s5
  $region1: #{tpu_custom_call.1} parent=0
    #allocation3 [shape = 'u8[65536]{0}', space=vmem, size = 0x10000, scoped, tag = 'output window, operand 0']
    #allocation4 [shape = 's32[2]{0}', space=sflag, size = 0x8, scoped, tag = 'scoped memory for tpu_custom_call.1']
    #allocation5 [shape = 'u8[1024]{0}', space=vmem, size = 0x400, scoped, tag = 'output window, operand 2']
    #allocation6 [shape = 's32[2]{0}', space=sflag, size = 0x8, scoped, tag = 'scoped memory for tpu_custom_call.1']
    %15 = vsyncpa [#allocation4], 0
    %s16 = scalar_lea.sflag [#allocation4], 1
    %17 = vsyncpa %s16, 0
    %18 = vsyncpa [#allocation6], 0
    %s19 = scalar_lea.sflag [#allocation6], 1
    %20 = vsyncpa %s19, 0
    loop: start=0, step=1, limit=4
    $region2: #{tpu_custom_call.1} parent=1 // loop_pre_header
      _
    $region3: #{tpu_custom_call.1} parent=1 // loop_header
      %s22 = sphi 0, %s26
      %p23 = scmp.ge.s32.totalorder %s22, 4
      %s32 = sphi 0, %s34
      %s35 = sphi 0, %s32
      %s36 = sphi 0, %s35
      %s52 = sphi 0, %s36
      %s56 = sphi 0, %s56
      %s58 = sphi 0, %s56
      %s59 = sphi 0, %s58
      %s73 = sphi 0, %s59
      %s77 = sphi 0, %s77
      %s79 = sphi 0, %s77
      %s80 = sphi 0, %s79
      %s94 = sphi 0, %s80
      %s98 = sphi 0, %s98
      %s100 = sphi 0, %s98
      %s101 = sphi 0, %s100
      %s115 = sphi 0, %s101
      %s119 = sphi 0, %s119
      %s121 = sphi 0, %s119
      %s122 = sphi 0, %s121
      %s136 = sphi 0, %s122
      %s140 = sphi 0, %s140
      %s142 = sphi 0, %s140
      %s143 = sphi 0, %s142
      %s157 = sphi 0, %s143
      %s163 = sphi 0, %s165
      %s166 = sphi 0, %s163
      %s167 = sphi 0, %s166
      %s183 = sphi 0, %s167
      %s189 = sphi 0, %s191
      %s192 = sphi 0, %s189
      %s193 = sphi 0, %s192
      %s209 = sphi 0, %s193
      %s215 = sphi 0, %s217
      %s218 = sphi 0, %s215
      %s219 = sphi 0, %s218
      %s235 = sphi 0, %s219
    $region4: #{tpu_custom_call.1} parent=1 // loop_header_branch
      %25 = sbr.rel (%p23) target = $region8
    $region5: #{tpu_custom_call.1} parent=1 // loop_body
      %s27 = ssub.s32 %s22, 1
      %s28 = ssub.s32 %s22, 2
      %s29 = sadd.s32 %s22, 1
      %s30 = ssub.s32 %s22, %s29
      %p31 = scmp.eq.s32.totalorder %s30, 0
      %s33 = sadd.s32 %s32, 1
      %s34 = scalar_select %p31, %s32, %s33
      %p37 = pneg %p31
      %p38 = scmp.eq.s32.totalorder %s22, 1
      %p39 = por %p37, %p38
      %p40 = scmp.ne.s32.totalorder %s32, %s35
      %p41 = scmp.eq.s32.totalorder %s22, 0
      %p42 = por %p40, %p41
      %p43 = scmp.ne.s32.totalorder %s32, %s35
      %p44 = scmp.eq.s32.totalorder %s27, 1
      %p45 = por %p43, %p44
      %p46 = scmp.ne.s32.totalorder %s35, %s36
      %p47 = scmp.eq.s32.totalorder %s27, 0
      %p48 = por %p46, %p47
      %p49 = scmp.ne.s32.totalorder %s35, %s36
      %p50 = scmp.eq.s32.totalorder %s28, 1
      %p51 = por %p49, %p50
      %p53 = scmp.ne.s32.totalorder %s36, %s52
      %p54 = scmp.eq.s32.totalorder %s28, 0
      %p55 = por %p53, %p54
      %s57 = sadd.s32 %s56, 1
      %p60 = scmp.eq.s32.totalorder %s22, 1
      %p61 = scmp.ne.s32.totalorder %s56, %s58
      %p62 = scmp.eq.s32.totalorder %s22, 0
      %p63 = por %p61, %p62
      %p64 = scmp.ne.s32.totalorder %s56, %s58
      %p65 = scmp.eq.s32.totalorder %s27, 1
      %p66 = por %p64, %p65
      %p67 = scmp.ne.s32.totalorder %s58, %s59
      %p68 = scmp.eq.s32.totalorder %s27, 0
      %p69 = por %p67, %p68
      %p70 = scmp.ne.s32.totalorder %s58, %s59
      %p71 = scmp.eq.s32.totalorder %s28, 1
      %p72 = por %p70, %p71
      %p74 = scmp.ne.s32.totalorder %s59, %s73
      %p75 = scmp.eq.s32.totalorder %s28, 0
      %p76 = por %p74, %p75
      %s78 = sadd.s32 %s77, 1
      %p81 = scmp.eq.s32.totalorder %s22, 1
      %p82 = scmp.ne.s32.totalorder %s77, %s79
      %p83 = scmp.eq.s32.totalorder %s22, 0
      %p84 = por %p82, %p83
      %p85 = scmp.ne.s32.totalorder %s77, %s79
      %p86 = scmp.eq.s32.totalorder %s27, 1
      %p87 = por %p85, %p86
      %p88 = scmp.ne.s32.totalorder %s79, %s80
      %p89 = scmp.eq.s32.totalorder %s27, 0
      %p90 = por %p88, %p89
      %p91 = scmp.ne.s32.totalorder %s79, %s80
      %p92 = scmp.eq.s32.totalorder %s28, 1
      %p93 = por %p91, %p92
      %p95 = scmp.ne.s32.totalorder %s80, %s94
      %p96 = scmp.eq.s32.totalorder %s28, 0
      %p97 = por %p95, %p96
      %s99 = sadd.s32 %s98, 1
      %p102 = scmp.eq.s32.totalorder %s22, 1
      %p103 = scmp.ne.s32.totalorder %s98, %s100
      %p104 = scmp.eq.s32.totalorder %s22, 0
      %p105 = por %p103, %p104
      %p106 = scmp.ne.s32.totalorder %s98, %s100
      %p107 = scmp.eq.s32.totalorder %s27, 1
      %p108 = por %p106, %p107
      %p109 = scmp.ne.s32.totalorder %s100, %s101
      %p110 = scmp.eq.s32.totalorder %s27, 0
      %p111 = por %p109, %p110
      %p112 = scmp.ne.s32.totalorder %s100, %s101
      %p113 = scmp.eq.s32.totalorder %s28, 1
      %p114 = por %p112, %p113
      %p116 = scmp.ne.s32.totalorder %s101, %s115
      %p117 = scmp.eq.s32.totalorder %s28, 0
      %p118 = por %p116, %p117
      %s120 = sadd.s32 %s119, 1
      %p123 = scmp.eq.s32.totalorder %s22, 1
      %p124 = scmp.ne.s32.totalorder %s119, %s121
      %p125 = scmp.eq.s32.totalorder %s22, 0
      %p126 = por %p124, %p125
      %p127 = scmp.ne.s32.totalorder %s119, %s121
      %p128 = scmp.eq.s32.totalorder %s27, 1
      %p129 = por %p127, %p128
      %p130 = scmp.ne.s32.totalorder %s121, %s122
      %p131 = scmp.eq.s32.totalorder %s27, 0
      %p132 = por %p130, %p131
      %p133 = scmp.ne.s32.totalorder %s121, %s122
      %p134 = scmp.eq.s32.totalorder %s28, 1
      %p135 = por %p133, %p134
      %p137 = scmp.ne.s32.totalorder %s122, %s136
      %p138 = scmp.eq.s32.totalorder %s28, 0
      %p139 = por %p137, %p138
      %s141 = sadd.s32 %s140, 1
      %p144 = scmp.eq.s32.totalorder %s22, 1
      %p145 = scmp.ne.s32.totalorder %s140, %s142
      %p146 = scmp.eq.s32.totalorder %s22, 0
      %p147 = por %p145, %p146
      %p148 = scmp.ne.s32.totalorder %s140, %s142
      %p149 = scmp.eq.s32.totalorder %s27, 1
      %p150 = por %p148, %p149
      %p151 = scmp.ne.s32.totalorder %s142, %s143
      %p152 = scmp.eq.s32.totalorder %s27, 0
      %p153 = por %p151, %p152
      %p154 = scmp.ne.s32.totalorder %s142, %s143
      %p155 = scmp.eq.s32.totalorder %s28, 1
      %p156 = por %p154, %p155
      %p158 = scmp.ne.s32.totalorder %s143, %s157
      %p159 = scmp.eq.s32.totalorder %s28, 0
      %p160 = por %p158, %p159
      %s161 = ssub.s32 %s22, %s29
      %p162 = scmp.eq.s32.totalorder %s161, 0
      %s164 = sadd.s32 %s163, 1
      %s165 = scalar_select %p162, %s163, %s164
      %p168 = pneg %p162
      %p169 = scmp.eq.s32.totalorder %s22, 1
      %p170 = por %p168, %p169
      %p171 = scmp.ne.s32.totalorder %s163, %s166
      %p172 = scmp.eq.s32.totalorder %s22, 0
      %p173 = por %p171, %p172
      %p174 = scmp.ne.s32.totalorder %s163, %s166
      %p175 = scmp.eq.s32.totalorder %s27, 1
      %p176 = por %p174, %p175
      %p177 = scmp.ne.s32.totalorder %s166, %s167
      %p178 = scmp.eq.s32.totalorder %s27, 0
      %p179 = por %p177, %p178
      %p180 = scmp.ne.s32.totalorder %s166, %s167
      %p181 = scmp.eq.s32.totalorder %s28, 1
      %p182 = por %p180, %p181
      %p184 = scmp.ne.s32.totalorder %s167, %s183
      %p185 = scmp.eq.s32.totalorder %s28, 0
      %p186 = por %p184, %p185
      %s187 = ssub.s32 %s22, %s29
      %p188 = scmp.eq.s32.totalorder %s187, 0
      %s190 = sadd.s32 %s189, 1
      %s191 = scalar_select %p188, %s189, %s190
      %p194 = pneg %p188
      %p195 = scmp.eq.s32.totalorder %s22, 1
      %p196 = por %p194, %p195
      %p197 = scmp.ne.s32.totalorder %s189, %s192
      %p198 = scmp.eq.s32.totalorder %s22, 0
      %p199 = por %p197, %p198
      %p200 = scmp.ne.s32.totalorder %s189, %s192
      %p201 = scmp.eq.s32.totalorder %s27, 1
      %p202 = por %p200, %p201
      %p203 = scmp.ne.s32.totalorder %s192, %s193
      %p204 = scmp.eq.s32.totalorder %s27, 0
      %p205 = por %p203, %p204
      %p206 = scmp.ne.s32.totalorder %s192, %s193
      %p207 = scmp.eq.s32.totalorder %s28, 1
      %p208 = por %p206, %p207
      %p210 = scmp.ne.s32.totalorder %s193, %s209
      %p211 = scmp.eq.s32.totalorder %s28, 0
      %p212 = por %p210, %p211
      %s213 = ssub.s32 %s22, %s29
      %p214 = scmp.eq.s32.totalorder %s213, 0
      %s216 = sadd.s32 %s215, 1
      %s217 = scalar_select %p214, %s215, %s216
      %p220 = pneg %p214
      %p221 = scmp.eq.s32.totalorder %s22, 1
      %p222 = por %p220, %p221
      %p223 = scmp.ne.s32.totalorder %s215, %s218
      %p224 = scmp.eq.s32.totalorder %s22, 0
      %p225 = por %p223, %p224
      %p226 = scmp.ne.s32.totalorder %s215, %s218
      %p227 = scmp.eq.s32.totalorder %s27, 1
      %p228 = por %p226, %p227
      %p229 = scmp.ne.s32.totalorder %s218, %s219
      %p230 = scmp.eq.s32.totalorder %s27, 0
      %p231 = por %p229, %p230
      %p232 = scmp.ne.s32.totalorder %s218, %s219
      %p233 = scmp.eq.s32.totalorder %s28, 1
      %p234 = por %p232, %p233
      %p236 = scmp.ne.s32.totalorder %s219, %s235
      %p237 = scmp.eq.s32.totalorder %s28, 0
      %p238 = por %p236, %p237
      %p239 = scmp.le.s32.totalorder 1, %s22
      %p240 = scmp.lt.s32.totalorder %s22, 3
      %p241 = pnand %p239, %p240
      %p242 = pneg %p241
      // Predicated region
      $region9: #{tpu_custom_call.1} parent=5 // pred_check
        _
      $region10: #{tpu_custom_call.1} parent=5 // pred_check_branch
        %244 = sbr.rel (%p241) target = $region12
      $region11: #{tpu_custom_call.1} parent=5 // pred_region
        %s245 = ssub.s32 %s22, 1
        // Predicated region
        $region13: #{tpu_custom_call.1} parent=11 // pred_check
          %p246 = pneg %p69
        $region14: #{tpu_custom_call.1} parent=11 // pred_check_branch
          %248 = sbr.rel (%p246) target = $region16
        $region15: #{tpu_custom_call.1} parent=11 // pred_region
          _
        $region16: #{tpu_custom_call.1} parent=11 // pred_fallthru
          _
        // Predicated region
        $region17: #{tpu_custom_call.1} parent=11 // pred_check
          %p249 = pneg %p90
        $region18: #{tpu_custom_call.1} parent=11 // pred_check_branch
          %251 = sbr.rel (%p249) target = $region20
        $region19: #{tpu_custom_call.1} parent=11 // pred_region
          _
        $region20: #{tpu_custom_call.1} parent=11 // pred_fallthru
          _
        // Predicated region
        $region21: #{tpu_custom_call.1} parent=11 // pred_check
          %p252 = pneg %p111
        $region22: #{tpu_custom_call.1} parent=11 // pred_check_branch
          %254 = sbr.rel (%p252) target = $region24
        $region23: #{tpu_custom_call.1} parent=11 // pred_region
          _
        $region24: #{tpu_custom_call.1} parent=11 // pred_fallthru
          _
        // Predicated region
        $region25: #{tpu_custom_call.1} parent=11 // pred_check
          %p255 = pneg %p132
        $region26: #{tpu_custom_call.1} parent=11 // pred_check_branch
          %257 = sbr.rel (%p255) target = $region28
        $region27: #{tpu_custom_call.1} parent=11 // pred_region
          _
        $region28: #{tpu_custom_call.1} parent=11 // pred_fallthru
          _
        // Predicated region
        $region29: #{tpu_custom_call.1} parent=11 // pred_check
          %p258 = pneg %p153
        $region30: #{tpu_custom_call.1} parent=11 // pred_check_branch
          %260 = sbr.rel (%p258) target = $region32
        $region31: #{tpu_custom_call.1} parent=11 // pred_region
          _
        $region32: #{tpu_custom_call.1} parent=11 // pred_fallthru
          _
      $region12: #{tpu_custom_call.1} parent=5 // pred_fallthru
        _
      %p261 = scmp.lt.s32.totalorder %s22, 2
      // Predicated region
      $region33: #{tpu_custom_call.1} parent=5 // pred_check
        %p262 = pneg %p261
      $region34: #{tpu_custom_call.1} parent=5 // pred_check_branch
        %264 = sbr.rel (%p262) target = $region36
      $region35: #{tpu_custom_call.1} parent=5 // pred_region
        // Predicated region
        $region37: #{tpu_custom_call.1} parent=35 // pred_check
          %p265 = pneg %p42
        $region38: #{tpu_custom_call.1} parent=35 // pred_check_branch
          %267 = sbr.rel (%p265) target = $region40
        $region39: #{tpu_custom_call.1} parent=35 // pred_region
          %s268 = smul.u32 16, %s22
          %p269 = scmp.lt.s32.totalorder %s268, 31
          %s270 = scalar_select %p269, %s268, 31
          %s271 = smul.addr %s270, 4
          %s272 = scalar_lea.vmem %s0, %s271
          %s273 = smul.u32 16, %s22
        $region40: #{tpu_custom_call.1} parent=35 // pred_fallthru
          _
      $region36: #{tpu_custom_call.1} parent=5 // pred_fallthru
        _
      %p274 = scmp.le.s32.totalorder 1, %s22
      %p275 = scmp.lt.s32.totalorder %s22, 3
      %p276 = pnand %p274, %p275
      %p277 = pneg %p276
      // Predicated region
      $region41: #{tpu_custom_call.1} parent=5 // pred_check
        _
      $region42: #{tpu_custom_call.1} parent=5 // pred_check_branch
        %279 = sbr.rel (%p276) target = $region44
      $region43: #{tpu_custom_call.1} parent=5 // pred_region
        %s280 = ssub.s32 %s22, 1
        %s281 = smul.u32 16, %s27
        %p282 = scmp.lt.s32.totalorder %s281, 31
        %s283 = scalar_select %p282, %s281, 31
        %s284 = smul.addr %s283, 4
        %s285 = scalar_lea.vmem %s0, %s284
        %p286 = pneg %p48
        %p287 = pneg %p45
        %p288 = pneg %p69
        %p289 = pneg %p66
        %p290 = pneg %p90
        %p291 = pneg %p87
        %p292 = pneg %p111
        %p293 = pneg %p108
        %p294 = pneg %p132
        %p295 = pneg %p129
        %p296 = pneg %p153
        %p297 = pneg %p150
        %p298 = pneg %p179
        %p299 = pneg %p176
        %s300 = sand.u32 %s166, 1
        %s301 = scalar_lea.sflag [#allocation4], %s300
        %s302 = sand.u32 %s166, 1
        %s303 = smul.addr %s302, 64
        %s304 = scalar_lea.vmem [#allocation3], %s303
        %p305 = pneg %p205
        %p306 = pneg %p202
        %s307 = smul.u32 16, %s27
        %p308 = scmp.lt.s32.totalorder %s307, 31
        %s309 = scalar_select %p308, %s307, 31
        %s310 = smul.addr %s309, 8
        %s311 = scalar_lea.vmem %s7, %s310
        %p312 = pneg %p231
        %p313 = pneg %p228
        %s314 = sand.u32 %s218, 1
        %s315 = scalar_lea.sflag [#allocation6], %s314
        %s316 = sand.u32 %s218, 1
        %s317 = scalar_lea.vmem [#allocation5], %s316
        %s318 = smul.u32 16, %s27
        %p319 = scmp.lt.s32.totalorder %s318, 31
        %s320 = scalar_select %p319, %s318, 31
        %s321 = smul.addr %s320, 4
        %s322 = scalar_lea.vmem %s0, %s321
        %s323 = smul.u32 16, %s27
        %s324 = smul.u32 16, %s27
        %s325 = smul.u32 16, %s27
        %p326 = scmp.lt.s32.totalorder %s325, 31
        %s327 = scalar_select %p326, %s325, 31
        %s328 = smul.addr %s327, 8
        %s329 = scalar_lea.vmem %s7, %s328
        %s330 = smul.u32 16, %s27
        %v332 = vld [vmem:[%s322] sm:$0xf]
        %v333 = vld [vmem:[%s322 + $0x4] sm:$0xf]
        %v334 = vld [vmem:[%s322 + $0x8] sm:$0xf]
        %v335 = vld [vmem:[%s322 + $0xc] sm:$0xf]
        %v336 = vld [vmem:[%s322 + $0x10] sm:$0xf]
        %v337 = vld [vmem:[%s322 + $0x14] sm:$0xf]
        %v338 = vld [vmem:[%s322 + $0x18] sm:$0xf]
        %v339 = vld [vmem:[%s322 + $0x1c] sm:$0xf]
        %v340 = vld [vmem:[%s322 + $0x20] sm:$0xf]
        %v341 = vld [vmem:[%s322 + $0x24] sm:$0xf]
        %v342 = vld [vmem:[%s322 + $0x28] sm:$0xf]
        %v343 = vld [vmem:[%s322 + $0x2c] sm:$0xf]
        %v344 = vld [vmem:[%s322 + $0x30] sm:$0xf]
        %v345 = vld [vmem:[%s322 + $0x34] sm:$0xf]
        %v346 = vld [vmem:[%s322 + $0x38] sm:$0xf]
        %v347 = vld [vmem:[%s322 + $0x3c] sm:$0xf]
        %v348 = vld [vmem:[%s1] sm:$0xf]
        %v349 = vld [vmem:[%s1 + $0x4] sm:$0xf]
        %v350 = vld [vmem:[%s1 + $0x8] sm:$0xf]
        %v351 = vld [vmem:[%s1 + $0xc] sm:$0xf]
        %v352 = vld [vmem:[%s1 + $0x10] sm:$0xf]
        %v353 = vld [vmem:[%s1 + $0x14] sm:$0xf]
        %v354 = vld [vmem:[%s1 + $0x18] sm:$0xf]
        %v355 = vld [vmem:[%s1 + $0x1c] sm:$0xf]
        %v356 = vld [vmem:[%s2] sm:$0x1]
        %v358 = vlaneseq
        %v359 = vshrl.u32 %v358, 7
        %v360 = vsub.s32 0, %v359
        %v361 = vrot.slane %v356, %v360
        %v379 = vunpack.c.l.b16 %v332
        %v380 = vunpack.c.l.b16 %v333
        %v381 = vunpack.c.l.b16 %v334
        %v382 = vunpack.c.l.b16 %v335
        %v383 = vunpack.c.l.b16 %v336
        %v384 = vunpack.c.l.b16 %v337
        %v385 = vunpack.c.l.b16 %v338
        %v386 = vunpack.c.l.b16 %v339
        %v387 = vunpack.c.l.b16 %v340
        %v388 = vunpack.c.l.b16 %v341
        %v389 = vunpack.c.l.b16 %v342
        %v390 = vunpack.c.l.b16 %v343
        %v391 = vunpack.c.l.b16 %v344
        %v392 = vunpack.c.l.b16 %v345
        %v393 = vunpack.c.l.b16 %v346
        %v394 = vunpack.c.l.b16 %v347
        %v395 = vpack.c.b16 %v380, %v379
        %v396 = vpack.c.b16 %v382, %v381
        %v397 = vpack.c.b16 %v384, %v383
        %v398 = vpack.c.b16 %v386, %v385
        %v399 = vpack.c.b16 %v388, %v387
        %v400 = vpack.c.b16 %v390, %v389
        %v401 = vpack.c.b16 %v392, %v391
        %v402 = vpack.c.b16 %v394, %v393
        %v411 = vunpack.c.l.b16 %v348
        %v412 = vunpack.c.l.b16 %v349
        %v413 = vunpack.c.l.b16 %v350
        %v414 = vunpack.c.l.b16 %v351
        %v415 = vunpack.c.l.b16 %v352
        %v416 = vunpack.c.l.b16 %v353
        %v417 = vunpack.c.l.b16 %v354
        %v418 = vunpack.c.l.b16 %v355
        %v419 = vpack.c.b16 %v412, %v411
        %v420 = vpack.c.b16 %v414, %v413
        %v421 = vpack.c.b16 %v416, %v415
        %v422 = vpack.c.b16 %v418, %v417
        %vm427 = vcmask 523264
        %v429 = vsel %vm427, %v395, 0
        %v432 = vsel %vm427, %v396, 0
        %v435 = vsel %vm427, %v397, 0
        %v438 = vsel %vm427, %v398, 0
        %v441 = vsel %vm427, %v399, 0
        %v444 = vsel %vm427, %v400, 0
        %v447 = vsel %vm427, %v401, 0
        %v450 = vsel %vm427, %v402, 0
        %452 = vmatprep.subr.bf16.mxu0 0
        %453 = vmatpush1.bf16.msra.mxu0 0
        %454 = vmatprep.subr.bf16.mxu0 0
        %455 = vmatpush1.bf16.msra.mxu0 0
        %456 = vmatprep.subr.bf16.mxu0 0
        %457 = vmatpush1.bf16.msra.mxu0 0
        %458 = vmatprep.subr.bf16.mxu0 0
        %459 = vmatpush1.bf16.msra.mxu0 0
        %460 = vmatprep.subr.bf16.mxu0 0
        %461 = vmatpush1.bf16.msra.mxu0 %v422
        %462 = vmatprep.subr.bf16.mxu0 0
        %463 = vmatpush1.bf16.msra.mxu0 %v421
        %464 = vmatprep.subr.bf16.mxu0 0
        %465 = vmatpush1.bf16.msra.mxu0 %v420
        %466 = vmatprep.subr.bf16.mxu0 0
        %467 = vmatpush1.bf16.msra.mxu0 %v419
        %468 = vmatprep.subr.bf16.mxu0 0
        %469 = vmatpush2.bf16.msra.mxu0 0
        %470 = vmatprep.subr.bf16.mxu0 0
        %471 = vmatpush2.bf16.msra.mxu0 0
        %472 = vmatprep.subr.bf16.mxu0 0
        %473 = vmatpush2.bf16.msra.mxu0 0
        %474 = vmatprep.subr.bf16.mxu0 0
        %475 = vmatpush2.bf16.msra.mxu0 0
        %476 = vmatprep.subr.bf16.mxu0 0
        %477 = vmatpush2.bf16.msra.mxu0 0
        %478 = vmatprep.subr.bf16.mxu0 0
        %479 = vmatpush2.bf16.msra.mxu0 0
        %480 = vmatprep.subr.bf16.mxu0 0
        %481 = vmatpush2.bf16.msra.mxu0 0
        %482 = vmatprep.subr.bf16.mxu0 0
        %483 = vmatpush2.bf16.msra.mxu0 0
        %484 = vmatprep.mubr.bf16.mxu0 0
        %485 = vmatmul.mubr.bf16.gmra.mxu0 %v429
        %v486 = vpop.f32.mrf.mxu0
        %v487 = vadd.f32 %v361, %v486
        %v488 = vpop.f32.mrf.mxu0
        %v489 = vpop.f32.mrf.mxu0
        %v490 = vadd.f32 %v361, %v489
        %v491 = vpop.f32.mrf.mxu0
        %492 = vmatprep.mubr.bf16.mxu0 0
        %493 = vmatmul.mubr.bf16.gmra.mxu0 %v432
        %v494 = vpop.f32.mrf.mxu0
        %v495 = vadd.f32 %v361, %v494
        %v496 = vpop.f32.mrf.mxu0
        %v497 = vpop.f32.mrf.mxu0
        %v498 = vadd.f32 %v361, %v497
        %v499 = vpop.f32.mrf.mxu0
        %500 = vmatprep.mubr.bf16.mxu0 0
        %501 = vmatmul.mubr.bf16.gmra.mxu0 %v435
        %v502 = vpop.f32.mrf.mxu0
        %v503 = vadd.f32 %v361, %v502
        %v504 = vpop.f32.mrf.mxu0
        %v505 = vpop.f32.mrf.mxu0
        %v506 = vadd.f32 %v361, %v505
        %v507 = vpop.f32.mrf.mxu0
        %508 = vmatprep.mubr.bf16.mxu0 0
        %509 = vmatmul.mubr.bf16.gmra.mxu0 %v438
        %v510 = vpop.f32.mrf.mxu0
        %v511 = vadd.f32 %v361, %v510
        %v512 = vpop.f32.mrf.mxu0
        %v513 = vpop.f32.mrf.mxu0
        %v514 = vadd.f32 %v361, %v513
        %v515 = vpop.f32.mrf.mxu0
        %516 = vmatprep.mubr.bf16.mxu0 0
        %517 = vmatmul.mubr.bf16.gmra.mxu0 %v441
        %v518 = vpop.f32.mrf.mxu0
        %v519 = vadd.f32 %v361, %v518
        %v520 = vpop.f32.mrf.mxu0
        %v521 = vpop.f32.mrf.mxu0
        %v522 = vadd.f32 %v361, %v521
        %v523 = vpop.f32.mrf.mxu0
        %524 = vmatprep.mubr.bf16.mxu0 0
        %525 = vmatmul.mubr.bf16.gmra.mxu0 %v444
        %v526 = vpop.f32.mrf.mxu0
        %v527 = vadd.f32 %v361, %v526
        %v528 = vpop.f32.mrf.mxu0
        %v529 = vpop.f32.mrf.mxu0
        %v530 = vadd.f32 %v361, %v529
        %v531 = vpop.f32.mrf.mxu0
        %532 = vmatprep.mubr.bf16.mxu0 0
        %533 = vmatmul.mubr.bf16.gmra.mxu0 %v447
        %v534 = vpop.f32.mrf.mxu0
        %v535 = vadd.f32 %v361, %v534
        %v536 = vpop.f32.mrf.mxu0
        %v537 = vpop.f32.mrf.mxu0
        %v538 = vadd.f32 %v361, %v537
        %v539 = vpop.f32.mrf.mxu0
        %540 = vmatprep.mubr.bf16.mxu0 0
        %541 = vmatmul.mubr.bf16.gmra.mxu0 %v450
        %v542 = vpop.f32.mrf.mxu0
        %v543 = vadd.f32 %v361, %v542
        %v544 = vpop.f32.mrf.mxu0
        %v545 = vpop.f32.mrf.mxu0
        %v546 = vadd.f32 %v361, %v545
        %v547 = vpop.f32.mrf.mxu0
        %548 = vdwg.mxu0
        %v549 = vld [vmem:[%s4] sm:$0x1]
        %v551 = vlaneseq
        %v552 = vshrl.u32 %v551, 7
        %v553 = vsub.s32 0, %v552
        %v554 = vrot.slane %v549, %v553
        %v556 = vmul.f32 %v487, %v554
        %v557 = vmul.f32 %v490, %v554
        %v558 = vmul.f32 %v495, %v554
        %v559 = vmul.f32 %v498, %v554
        %v560 = vmul.f32 %v503, %v554
        %v561 = vmul.f32 %v506, %v554
        %v562 = vmul.f32 %v511, %v554
        %v563 = vmul.f32 %v514, %v554
        %v564 = vmul.f32 %v519, %v554
        %v565 = vmul.f32 %v522, %v554
        %v566 = vmul.f32 %v527, %v554
        %v567 = vmul.f32 %v530, %v554
        %v568 = vmul.f32 %v535, %v554
        %v569 = vmul.f32 %v538, %v554
        %v570 = vmul.f32 %v543, %v554
        %v571 = vmul.f32 %v546, %v554
        %572 = vadd.xlane.f32.xlu0 %v556
        %v573 = vpop.xlane.xlu0 %572
        %574 = vadd.xlane.f32.xlu0 %v557
        %v575 = vpop.xlane.xlu0 %574
        %576 = vadd.xlane.f32.xlu0 %v558
        %v577 = vpop.xlane.xlu0 %576
        %578 = vadd.xlane.f32.xlu0 %v559
        %v579 = vpop.xlane.xlu0 %578
        %580 = vadd.xlane.f32.xlu0 %v560
        %v581 = vpop.xlane.xlu0 %580
        %582 = vadd.xlane.f32.xlu0 %v561
        %v583 = vpop.xlane.xlu0 %582
        %584 = vadd.xlane.f32.xlu0 %v562
        %v585 = vpop.xlane.xlu0 %584
        %586 = vadd.xlane.f32.xlu0 %v563
        %v587 = vpop.xlane.xlu0 %586
        %588 = vadd.xlane.f32.xlu0 %v564
        %v589 = vpop.xlane.xlu0 %588
        %590 = vadd.xlane.f32.xlu0 %v565
        %v591 = vpop.xlane.xlu0 %590
        %592 = vadd.xlane.f32.xlu0 %v566
        %v593 = vpop.xlane.xlu0 %592
        %594 = vadd.xlane.f32.xlu0 %v567
        %v595 = vpop.xlane.xlu0 %594
        %596 = vadd.xlane.f32.xlu0 %v568
        %v597 = vpop.xlane.xlu0 %596
        %598 = vadd.xlane.f32.xlu0 %v569
        %v599 = vpop.xlane.xlu0 %598
        %600 = vadd.xlane.f32.xlu0 %v570
        %v601 = vpop.xlane.xlu0 %600
        %602 = vadd.xlane.f32.xlu0 %v571
        %v603 = vpop.xlane.xlu0 %602
        %s604 = sld [smem:[#allocation2]]
        %v605 = vstv %s604
        %v606 = vadd.f32 %v573, %v605
        %v607 = vadd.f32 %v575, %v605
        %v608 = vadd.f32 %v577, %v605
        %v609 = vadd.f32 %v579, %v605
        %v610 = vadd.f32 %v581, %v605
        %v611 = vadd.f32 %v583, %v605
        %v612 = vadd.f32 %v585, %v605
        %v613 = vadd.f32 %v587, %v605
        %v614 = vadd.f32 %v589, %v605
        %v615 = vadd.f32 %v591, %v605
        %v616 = vadd.f32 %v593, %v605
        %v617 = vadd.f32 %v595, %v605
        %v618 = vadd.f32 %v597, %v605
        %v619 = vadd.f32 %v599, %v605
        %v620 = vadd.f32 %v601, %v605
        %v621 = vadd.f32 %v603, %v605
        %vm622 = vcmask 7168
        %623 = vst.msk [vmem:[%s329] sm:$0xff] %vm622, %v606
        %624 = vst.msk [vmem:[%s329 + $0x8] sm:$0xff] %vm622, %v607
        %625 = vst.msk [vmem:[%s329 + $0x10] sm:$0xff] %vm622, %v608
        %626 = vst.msk [vmem:[%s329 + $0x18] sm:$0xff] %vm622, %v609
        %627 = vst.msk [vmem:[%s329 + $0x20] sm:$0xff] %vm622, %v610
        %628 = vst.msk [vmem:[%s329 + $0x28] sm:$0xff] %vm622, %v611
        %629 = vst.msk [vmem:[%s329 + $0x30] sm:$0xff] %vm622, %v612
        %630 = vst.msk [vmem:[%s329 + $0x38] sm:$0xff] %vm622, %v613
        %631 = vst.msk [vmem:[%s329 + $0x40] sm:$0xff] %vm622, %v614
        %632 = vst.msk [vmem:[%s329 + $0x48] sm:$0xff] %vm622, %v615
        %633 = vst.msk [vmem:[%s329 + $0x50] sm:$0xff] %vm622, %v616
        %634 = vst.msk [vmem:[%s329 + $0x58] sm:$0xff] %vm622, %v617
        %635 = vst.msk [vmem:[%s329 + $0x60] sm:$0xff] %vm622, %v618
        %636 = vst.msk [vmem:[%s329 + $0x68] sm:$0xff] %vm622, %v619
        %637 = vst.msk [vmem:[%s329 + $0x70] sm:$0xff] %vm622, %v620
        %638 = vst.msk [vmem:[%s329 + $0x78] sm:$0xff] %vm622, %v621
        %v639 = vld [vmem:[%s3] sm:$0x1]
        %640 = vmatprep.subr.mxu0 0.0
        %641 = vmatpush1.xpose.msra.mxu0 %v546
        %642 = vmatprep.subr.mxu0 0.0
        %643 = vmatpush1.xpose.msra.mxu0 %v543
        %644 = vmatprep.subr.mxu0 0.0
        %645 = vmatpush1.xpose.msra.mxu0 %v538
        %646 = vmatprep.subr.mxu0 0.0
        %647 = vmatpush1.xpose.msra.mxu0 %v535
        %648 = vmatprep.subr.mxu0 0.0
        %649 = vmatpush1.xpose.msra.mxu0 %v530
        %650 = vmatprep.subr.mxu0 0.0
        %651 = vmatpush1.xpose.msra.mxu0 %v527
        %652 = vmatprep.subr.mxu0 0.0
        %653 = vmatpush1.xpose.msra.mxu0 %v522
        %654 = vmatprep.subr.mxu0 0.0
        %655 = vmatpush1.xpose.msra.mxu0 %v519
        %656 = vmatprep.subr.mxu0 0.0
        %657 = vmatpush1.xpose.msra.mxu0 %v514
        %658 = vmatprep.subr.mxu0 0.0
        %659 = vmatpush1.xpose.msra.mxu0 %v511
        %660 = vmatprep.subr.mxu0 0.0
        %661 = vmatpush1.xpose.msra.mxu0 %v506
        %662 = vmatprep.subr.mxu0 0.0
        %663 = vmatpush1.xpose.msra.mxu0 %v503
        %664 = vmatprep.subr.mxu0 0.0
        %665 = vmatpush1.xpose.msra.mxu0 %v498
        %666 = vmatprep.subr.mxu0 0.0
        %667 = vmatpush1.xpose.msra.mxu0 %v495
        %668 = vmatprep.subr.mxu0 0.0
        %669 = vmatpush1.xpose.msra.mxu0 %v490
        %670 = vmatprep.subr.mxu0 0.0
        %671 = vmatpush1.xpose.msra.mxu0 %v487
        %672 = vmatprep.subr.mxu0 0.0
        %673 = vmatpush2.xpose.msra.mxu0 0.0
        %674 = vmatprep.subr.mxu0 0.0
        %675 = vmatpush2.xpose.msra.mxu0 0.0
        %676 = vmatprep.subr.mxu0 0.0
        %677 = vmatpush2.xpose.msra.mxu0 0.0
        %678 = vmatprep.subr.mxu0 0.0
        %679 = vmatpush2.xpose.msra.mxu0 0.0
        %680 = vmatprep.subr.mxu0 0.0
        %681 = vmatpush2.xpose.msra.mxu0 0.0
        %682 = vmatprep.subr.mxu0 0.0
        %683 = vmatpush2.xpose.msra.mxu0 0.0
        %684 = vmatprep.subr.mxu0 0.0
        %685 = vmatpush2.xpose.msra.mxu0 0.0
        %686 = vmatprep.subr.mxu0 0.0
        %687 = vmatpush2.xpose.msra.mxu0 0.0
        %688 = vmatprep.subr.mxu0 0.0
        %689 = vmatpush2.xpose.msra.mxu0 0.0
        %690 = vmatprep.subr.mxu0 0.0
        %691 = vmatpush2.xpose.msra.mxu0 0.0
        %692 = vmatprep.subr.mxu0 0.0
        %693 = vmatpush2.xpose.msra.mxu0 0.0
        %694 = vmatprep.subr.mxu0 0.0
        %695 = vmatpush2.xpose.msra.mxu0 0.0
        %696 = vmatprep.subr.mxu0 0.0
        %697 = vmatpush2.xpose.msra.mxu0 0.0
        %698 = vmatprep.subr.mxu0 0.0
        %699 = vmatpush2.xpose.msra.mxu0 0.0
        %700 = vmatprep.subr.mxu0 0.0
        %701 = vmatpush2.xpose.msra.mxu0 0.0
        %702 = vmatprep.subr.mxu0 0.0
        %703 = vmatpush2.xpose.msra.mxu0 0.0
        %704 = vmatprep.mubr.f32.mxu0 0.0
        %705 = vmatmul.mubr.f32.gmra.mxu0 %v639
        %v706 = vpop.f32.mrf.mxu0
        %v707 = vadd.f32 0.0, %v706
        %v708 = vpop.f32.mrf.mxu0
        %709 = vdwg.mxu0
        %710 = vst [vmem:[%s317] sm:$0x1] %v707
        %v711 = vpack.c.bf16 %v490, %v487
        %v712 = vpack.c.bf16 %v498, %v495
        %v713 = vpack.c.bf16 %v506, %v503
        %v714 = vpack.c.bf16 %v514, %v511
        %v715 = vpack.c.bf16 %v522, %v519
        %v716 = vpack.c.bf16 %v530, %v527
        %v717 = vpack.c.bf16 %v538, %v535
        %v718 = vpack.c.bf16 %v546, %v543
        %v727 = vunpack.c.l.b16 %v711
        %v728 = vunpack.c.h.b16 %v711
        %v729 = vunpack.c.l.b16 %v712
        %v730 = vunpack.c.h.b16 %v712
        %v731 = vunpack.c.l.b16 %v713
        %v732 = vunpack.c.h.b16 %v713
        %v733 = vunpack.c.l.b16 %v714
        %v734 = vunpack.c.h.b16 %v714
        %v735 = vunpack.c.l.b16 %v715
        %v736 = vunpack.c.h.b16 %v715
        %v737 = vunpack.c.l.b16 %v716
        %v738 = vunpack.c.h.b16 %v716
        %v739 = vunpack.c.l.b16 %v717
        %v740 = vunpack.c.h.b16 %v717
        %v741 = vunpack.c.l.b16 %v718
        %v742 = vunpack.c.h.b16 %v718
        %v743 = vpack.c.b16 %v727, %v727
        %v744 = vpack.c.b16 %v728, %v728
        %v745 = vpack.c.b16 %v729, %v729
        %v746 = vpack.c.b16 %v730, %v730
        %v747 = vpack.c.b16 %v731, %v731
        %v748 = vpack.c.b16 %v732, %v732
        %v749 = vpack.c.b16 %v733, %v733
        %v750 = vpack.c.b16 %v734, %v734
        %v751 = vpack.c.b16 %v735, %v735
        %v752 = vpack.c.b16 %v736, %v736
        %v753 = vpack.c.b16 %v737, %v737
        %v754 = vpack.c.b16 %v738, %v738
        %v755 = vpack.c.b16 %v739, %v739
        %v756 = vpack.c.b16 %v740, %v740
        %v757 = vpack.c.b16 %v741, %v741
        %v758 = vpack.c.b16 %v742, %v742
        %775 = vst [vmem:[%s304] sm:$0xf] %v743
        %776 = vst [vmem:[%s304 + $0x4] sm:$0xf] %v744
        %777 = vst [vmem:[%s304 + $0x8] sm:$0xf] %v745
        %778 = vst [vmem:[%s304 + $0xc] sm:$0xf] %v746
        %779 = vst [vmem:[%s304 + $0x10] sm:$0xf] %v747
        %780 = vst [vmem:[%s304 + $0x14] sm:$0xf] %v748
        %781 = vst [vmem:[%s304 + $0x18] sm:$0xf] %v749
        %782 = vst [vmem:[%s304 + $0x1c] sm:$0xf] %v750
        %783 = vst [vmem:[%s304 + $0x20] sm:$0xf] %v751
        %784 = vst [vmem:[%s304 + $0x24] sm:$0xf] %v752
        %785 = vst [vmem:[%s304 + $0x28] sm:$0xf] %v753
        %786 = vst [vmem:[%s304 + $0x2c] sm:$0xf] %v754
        %787 = vst [vmem:[%s304 + $0x30] sm:$0xf] %v755
        %788 = vst [vmem:[%s304 + $0x34] sm:$0xf] %v756
        %789 = vst [vmem:[%s304 + $0x38] sm:$0xf] %v757
        %790 = vst [vmem:[%s304 + $0x3c] sm:$0xf] %v758
        %s791 = sand.u32 %s166, 1
        %s792 = scalar_lea.sflag [#allocation4], %s791
        %s793 = sand.u32 %s166, 1
        %s794 = smul.addr %s793, 64
        %s795 = scalar_lea.vmem [#allocation3], %s794
        %s796 = smul.u32 16, %s27
        %p797 = scmp.lt.s32.totalorder %s796, 31
        %s798 = scalar_select %p797, %s796, 31
        %s799 = smul.addr %s798, 8
        %s800 = scalar_lea.vmem %s7, %s799
        %s801 = sand.u32 %s218, 1
        %s802 = scalar_lea.sflag [#allocation6], %s801
        %s803 = sand.u32 %s218, 1
        %s804 = scalar_lea.vmem [#allocation5], %s803
        // Predicated region
        $region45: #{tpu_custom_call.1} parent=43 // pred_check
          %p805 = pneg %p176
        $region46: #{tpu_custom_call.1} parent=43 // pred_check_branch
          %807 = sbr.rel (%p805) target = $region48
        $region47: #{tpu_custom_call.1} parent=43 // pred_region
          %s808 = smul.u32 16, %s27
          %s810 = ssub.s32 1024, 1024
          %811 = vsyncadd %s792, %s810
          %s812 = smul.addr %s808, 64
          %s813 = scalar_lea.hbm %s6, %s812
          %s814 = sshll.u32 %s795, 4
          %s815 = int_to_ptr.vmem [resolvable:$true] %s814
          %820 = dma.vmem_to_hbm [thread:$0]  %s815, 1024, %s813, %s792, 64, 64, 4
        $region48: #{tpu_custom_call.1} parent=43 // pred_fallthru
          _
        // Predicated region
        $region49: #{tpu_custom_call.1} parent=43 // pred_check
          %p821 = pneg %p202
        $region50: #{tpu_custom_call.1} parent=43 // pred_check_branch
          %823 = sbr.rel (%p821) target = $region52
        $region51: #{tpu_custom_call.1} parent=43 // pred_region
          %s824 = smul.u32 16, %s27
        $region52: #{tpu_custom_call.1} parent=43 // pred_fallthru
          _
        // Predicated region
        $region53: #{tpu_custom_call.1} parent=43 // pred_check
          %p825 = pneg %p228
        $region54: #{tpu_custom_call.1} parent=43 // pred_check_branch
          %827 = sbr.rel (%p825) target = $region56
        $region55: #{tpu_custom_call.1} parent=43 // pred_region
          %s829 = ssub.s32 16, 16
          %830 = vsyncadd %s802, %s829
          %s831 = smul.addr %s27, 16
          %s832 = scalar_lea.hbm %s8, %s831
          %s834 = sshll.u32 %s804, 4
          %s835 = int_to_ptr.vmem [resolvable:$true] %s834
          %837 = dma.vmem_to_hbm [thread:$0]  %s835, 16, %s832, %s802
        $region56: #{tpu_custom_call.1} parent=43 // pred_fallthru
          _
      $region44: #{tpu_custom_call.1} parent=5 // pred_fallthru
        _
      %p838 = scmp.le.s32.totalorder 2, %s22
      // Predicated region
      $region57: #{tpu_custom_call.1} parent=5 // pred_check
        %p839 = pneg %p838
      $region58: #{tpu_custom_call.1} parent=5 // pred_check_branch
        %841 = sbr.rel (%p839) target = $region60
      $region59: #{tpu_custom_call.1} parent=5 // pred_region
        %s842 = ssub.s32 %s22, 2
        // Predicated region
        $region61: #{tpu_custom_call.1} parent=59 // pred_check
          %p843 = pneg %p182
        $region62: #{tpu_custom_call.1} parent=59 // pred_check_branch
          %845 = sbr.rel (%p843) target = $region64
        $region63: #{tpu_custom_call.1} parent=59 // pred_region
          %s846 = sand.u32 %s167, 1
          %s847 = scalar_lea.sflag [#allocation4], %s846
          %s848 = sand.u32 %s167, 1
          %s849 = smul.addr %s848, 64
          %s850 = scalar_lea.vmem [#allocation3], %s849
          %851 = dma.done %s847, 1024
        $region64: #{tpu_custom_call.1} parent=59 // pred_fallthru
          _
        // Predicated region
        $region65: #{tpu_custom_call.1} parent=59 // pred_check
          %p852 = pneg %p208
        $region66: #{tpu_custom_call.1} parent=59 // pred_check_branch
          %854 = sbr.rel (%p852) target = $region68
        $region67: #{tpu_custom_call.1} parent=59 // pred_region
          %s855 = smul.u32 16, %s28
          %p856 = scmp.lt.s32.totalorder %s855, 31
          %s857 = scalar_select %p856, %s855, 31
          %s858 = smul.addr %s857, 8
          %s859 = scalar_lea.vmem %s7, %s858
        $region68: #{tpu_custom_call.1} parent=59 // pred_fallthru
          _
        // Predicated region
        $region69: #{tpu_custom_call.1} parent=59 // pred_check
          %p860 = pneg %p234
        $region70: #{tpu_custom_call.1} parent=59 // pred_check_branch
          %862 = sbr.rel (%p860) target = $region72
        $region71: #{tpu_custom_call.1} parent=59 // pred_region
          %s863 = sand.u32 %s219, 1
          %s864 = scalar_lea.sflag [#allocation6], %s863
          %s865 = sand.u32 %s219, 1
          %s866 = scalar_lea.vmem [#allocation5], %s865
          %867 = dma.done %s864, 16
        $region72: #{tpu_custom_call.1} parent=59 // pred_fallthru
          _
      $region60: #{tpu_custom_call.1} parent=5 // pred_fallthru
        _
    $region6: #{tpu_custom_call.1} parent=1 // loop_footer
      %s26 = sadd.s32 1, %s22
    $region7: #{tpu_custom_call.1} parent=1 // loop_footer_branch
      %21 = sbr.rel target = $region3
    $region8: #{tpu_custom_call.1} parent=1 // loop_exit
      _
    %868 = vsyncpa [#allocation4], 1
    %s869 = scalar_lea.sflag [#allocation4], 1
    %870 = vsyncpa %s869, 1
    %871 = vsyncpa [#allocation6], 1
    %s872 = scalar_lea.sflag [#allocation6], 1
    %873 = vsyncpa %s872, 1

</llo_original>
